<compile_context>
chip_gen: v7x
topology: tpu7x:2x2x1
jax: 0.10.0
libtpu: 0.0.40
codegen_flags: <defaults>
</compile_context>

<pallas_src>
import functools
import math

import jax
import jax.numpy as jnp
from jax.experimental import pallas as pl
from jax.experimental.pallas import tpu as pltpu

_LANES = 128


def _affine_kernel(u_ref, o_ref, *, scale, shift):
    # W = U01 * 2a - a  (pure VPU elementwise; scale/shift are immediates).
    o_ref[...] = u_ref[...] * scale + shift


def _pick_tile_rows(rows, sublane_multiple, row_bytes):
    """Pick a big-but-bounded sublane tile: ~1 MiB per block, >=2 grid steps."""
    if rows <= sublane_multiple:
        return rows                                   # full first dim is legal
    target = max(1, (1 << 20) // row_bytes)           # ~1 MiB of rows per block
    target = min(target, (rows + 1) // 2)             # keep >= 2 grid steps (megacore)
    target = max(sublane_multiple,
                 (target // sublane_multiple) * sublane_multiple)
    return min(target, rows)


def xavier_affine_forward(u01, bound):
    """Materialize W = u01 * 2a - a with a Pallas TPU kernel (no padding copies)."""
    shape = u01.shape
    dtype = u01.dtype
    n = u01.size
    itemsize = jnp.dtype(dtype).itemsize

    kernel = functools.partial(
        _affine_kernel, scale=float(2.0 * bound), shift=float(-bound))
    cost = pl.CostEstimate(flops=2 * n, transcendentals=0,
                           bytes_accessed=2 * n * itemsize)

    if n % _LANES == 0:
        # Lane-dense slab (rows, 128): free reshape, no pad / tail slice.
        rows = n // _LANES
        sub = {4: 8, 2: 16, 1: 32}.get(itemsize, 8)    # dtype-aware sublane multiple
        tile_rows = _pick_tile_rows(rows, sub, _LANES * itemsize)
        out2d = pl.pallas_call(
            kernel,
            out_shape=jax.ShapeDtypeStruct((rows, _LANES), dtype),
            grid=(pl.cdiv(rows, tile_rows),),
            in_specs=[pl.BlockSpec((tile_rows, _LANES), lambda i: (i, 0))],
            out_specs=pl.BlockSpec((tile_rows, _LANES), lambda i: (i, 0)),
            compiler_params=pltpu.CompilerParams(
                dimension_semantics=("parallel",)),
            cost_estimate=cost,
        )(u01.reshape(rows, _LANES))
        return out2d.reshape(shape)

    # Ragged total size: single full-array block (block_shape == array shape is
    # always legal), still zero padding copies.
    zero_idx = (0,) * u01.ndim
    return pl.pallas_call(
        kernel,
        out_shape=jax.ShapeDtypeStruct(shape, dtype),
        grid=(1,),
        in_specs=[pl.BlockSpec(shape, lambda i: zero_idx)],
        out_specs=pl.BlockSpec(shape, lambda i: zero_idx),
        compiler_params=pltpu.CompilerParams(
            dimension_semantics=("arbitrary",)),
        cost_estimate=cost,
    )(u01)


class MakeParameterW:
    """JAX/Pallas port of `make_Parameter_W`: holds a Xavier-uniform parameter;
    forward() returns it."""

    def __init__(self, in_features, out_features, *, key, dtype=jnp.float32):
        # torch.nn.init.xavier_uniform_ on an (in, out) tensor: U(-a, a) with
        # a = gain * sqrt(6 / (fan_in + fan_out)), gain = 1, fan_in+fan_out = in+out.
        self.bound = math.sqrt(6.0 / float(in_features + out_features))
        # TODO(synk): torch's RNG stream is not reproducible in JAX; the raw
        # U[0,1) sample is drawn with jax.random (same distribution after scaling).
        self._u01 = jax.random.uniform(key, (in_features, out_features), dtype=dtype)

    def forward(self):
        # forward() is a parameter read-out; the Pallas kernel materializes the
        # Xavier-scaled parameter (same u01/bound every call -> identical output).
        return xavier_affine_forward(self._u01, self.bound)


if __name__ == "__main__":
    key = jax.random.PRNGKey(0)
    in_features, out_features = 16, 32     # small GCN-style weight W

    module = MakeParameterW(in_features, out_features, key=key)
    w = module.forward()
    w = jax.block_until_ready(w)

    # Reference semantics: a Xavier-uniform (in, out) parameter, returned as-is.
    a = module.bound
    ref = module._u01 * (2.0 * a) - a
    assert w.shape == (in_features, out_features)
    assert w.dtype == jnp.float32
    assert jnp.allclose(w, ref, atol=1e-6, rtol=1e-6)
    assert bool(jnp.all(jnp.abs(w) <= a + 1e-6))

    # forward() is pure: repeated calls return the identical parameter values.
    w2 = jax.block_until_ready(module.forward())
    assert bool(jnp.array_equal(w, w2))

    print("KERNEL_OK")
</pallas_src>

<mosaic_0001>
module attributes {stable_mosaic.version = 11 : i64} {
  func.func @_affine_kernel(%arg0: i32, %arg1: memref<4x128xf32, #tpu.memory_space<vmem>>, %arg2: memref<4x128xf32, #tpu.memory_space<vmem>>) attributes {dimension_semantics = [#tpu.dimension_semantics<parallel>], iteration_bounds = array<i64: 1>, scalar_prefetch = 0 : i64, scratch_operands = 0 : i64, tpu.core_type = #tpu.core_type<tc>, window_params = [{transform_indices = @transform_0, window_bounds = array<i64: 4, 128>}, {transform_indices = @transform_1, window_bounds = array<i64: 4, 128>}]} {
    %c0 = arith.constant 0 : index
    %c0_0 = arith.constant 0 : index
    %0 = vector.load %arg1[%c0, %c0_0] : memref<4x128xf32, #tpu.memory_space<vmem>>, vector<4x128xf32>
    %cst = arith.constant 0.707106769 : f32
    %1 = vector.broadcast %cst : f32 to vector<4x128xf32>
    %2 = arith.mulf %0, %1 : vector<4x128xf32>
    %cst_1 = arith.constant -0.353553385 : f32
    %3 = vector.broadcast %cst_1 : f32 to vector<4x128xf32>
    %4 = arith.addf %2, %3 : vector<4x128xf32>
    %c0_2 = arith.constant 0 : index
    %c0_3 = arith.constant 0 : index
    %5 = vector.load %arg2[%c0_2, %c0_3] : memref<4x128xf32, #tpu.memory_space<vmem>>, vector<4x128xf32>
    tpu.vector_store %arg2[%c0_2, %c0_3], %4 {strides = array<i32>} : memref<4x128xf32, #tpu.memory_space<vmem>>, vector<4x128xf32>,
    return
  }
  func.func @transform_0(%arg0: i32) -> (i32, i32) {
    %c0_i32 = arith.constant 0 : i32
    %c0_i32_0 = arith.constant 0 : i32
    return %arg0, %c0_i32 : i32, i32
  }
  func.func @transform_1(%arg0: i32) -> (i32, i32) {
    %c0_i32 = arith.constant 0 : i32
    %c0_i32_0 = arith.constant 0 : i32
    return %arg0, %c0_i32 : i32, i32
  }
}

</mosaic_0001>

<llo_original>
// kernel: tpu_custom_call.1
$region0: #{tpu_custom_call.1}
  #allocation0 [shape = 'u32[]', space=smem, size = 0x4, offset = 0x4, fixed_abs, tag = 'smem constant byte address 0x4 - core index']
  #allocation1 [shape = 'u32[144,128]{1,0:T(1,128)}', space=vmem, size = 0x12000, scoped, tag = 'internal scratch']
  %s0 = inlined_call_operand.hbm [shape: f32[4,128], index: 0, kind: input, shape index: {}]
  %s1 = inlined_call_operand.hbm [shape: f32[4,128], index: 1, kind: output, shape index: {}]
  %s2 = sld [smem:[#allocation0]]
  $region18: #{tpu_custom_call.1} parent=0
    _
  %s4 = ssub.s32 1, %s2
  %s5 = scalar_select 0, %s4, %s2
  $region1: #{tpu_custom_call.1} parent=0
    #allocation2 [shape = 'u8[2048]{0}', space=vmem, size = 0x800, scoped, tag = 'input window, operand 0, single buffered']
    #allocation3 [shape = 's32[1]{0}', space=sflag, size = 0x4, scoped, tag = 'scoped memory for tpu_custom_call.1']
    #allocation4 [shape = 's32[1]{0}', space=sflag, size = 0x4, scoped, tag = 'scoped memory for tpu_custom_call.1']
    #allocation5 [shape = 'u8[2048]{0}', space=vmem, size = 0x800, scoped, tag = 'output window, operand 0, single buffered']
    %6 = vsyncpa [#allocation3], 0
    %7 = vsyncpa [#allocation4], 0
    // Predicated region
    $region2: #{tpu_custom_call.1} parent=1 // pred_check
      _
    $region3: #{tpu_custom_call.1} parent=1 // pred_check_branch
      %9 = sbr.rel (0) target = $region5
    $region4: #{tpu_custom_call.1} parent=1 // pred_region
      %s11 = ssub.s32 64, 64
      %12 = vsyncadd [#allocation3], %s11
      %s14 = sshll.u32 [#allocation2], 4
      %s15 = int_to_ptr.vmem [resolvable:$true] %s14
      %17 = dma.hbm_to_vmem [thread:$0]  %s0, 64, %s15, [#allocation3]
    $region5: #{tpu_custom_call.1} parent=1 // pred_fallthru
      _
    // Predicated region
    $region6: #{tpu_custom_call.1} parent=1 // pred_check
      _
    $region7: #{tpu_custom_call.1} parent=1 // pred_check_branch
      %19 = sbr.rel (0) target = $region9
    $region8: #{tpu_custom_call.1} parent=1 // pred_region
      %20 = dma.done [#allocation3], 64
    $region9: #{tpu_custom_call.1} parent=1 // pred_fallthru
      _
    %v21 = vld [vmem:[#allocation2] sm:$0xf]
    %v22 = vmul.f32 %v21, 0.70710677
    %v23 = vadd.f32 %v22, -0.35355338
    %24 = vst [vmem:[#allocation5] sm:$0xf] %v23
    // Predicated region
    $region10: #{tpu_custom_call.1} parent=1 // pred_check
      _
    $region11: #{tpu_custom_call.1} parent=1 // pred_check_branch
      %26 = sbr.rel (0) target = $region13
    $region12: #{tpu_custom_call.1} parent=1 // pred_region
      %s28 = ssub.s32 64, 64
      %29 = vsyncadd [#allocation4], %s28
      %s31 = sshll.u32 [#allocation5], 4
      %s32 = int_to_ptr.vmem [resolvable:$true] %s31
      %34 = dma.vmem_to_hbm [thread:$0]  %s32, 64, %s1, [#allocation4]
    $region13: #{tpu_custom_call.1} parent=1 // pred_fallthru
      _
    // Predicated region
    $region14: #{tpu_custom_call.1} parent=1 // pred_check
      _
    $region15: #{tpu_custom_call.1} parent=1 // pred_check_branch
      %36 = sbr.rel (0) target = $region17
    $region16: #{tpu_custom_call.1} parent=1 // pred_region
      %37 = dma.done [#allocation4], 64
    $region17: #{tpu_custom_call.1} parent=1 // pred_fallthru
      _
    %38 = vsyncpa [#allocation3], 1
    %39 = vsyncpa [#allocation4], 1

</llo_original>
